<compile_context>
chip_gen: v7x
topology: tpu7x:2x2x1
jax: 0.10.0
libtpu: 0.0.40
codegen_flags: <defaults>
</compile_context>

<pallas_src>
import math

import jax
import jax.numpy as jnp
from jax import lax
from jax.experimental import pallas as pl
from jax.experimental.pallas import tpu as pltpu

BN_EPS = 1e-5
TM = 256      # im2col rows per grid step (multiple of 8)
LANE = 128    # TPU lane width; K and Cout padded up to this


def _round_up(x, m):
    return (x + m - 1) // m * m


# ---------------------------------------------------------------------------
# Pass 1: conv as im2col matmul + per-channel sum / sum-of-squares reduction.
# ---------------------------------------------------------------------------
def _conv_stats_kernel(p_ref, w_ref, y_ref, sum_ref, sq_ref):
    """p_ref: (TM, Kp) bf16, w_ref: (Kp, Cp) bf16 (VMEM resident),
    y_ref: (TM, Cp) f32, sum_ref/sq_ref: (1, Cp) f32 resident accumulators."""
    y = jnp.dot(p_ref[...], w_ref[...], preferred_element_type=jnp.float32)
    y_ref[...] = y

    @pl.when(pl.program_id(0) == 0)
    def _():
        sum_ref[...] = jnp.zeros_like(sum_ref)
        sq_ref[...] = jnp.zeros_like(sq_ref)

    sum_ref[...] += jnp.sum(y, axis=0, keepdims=True)
    sq_ref[...] += jnp.sum(y * y, axis=0, keepdims=True)


# ---------------------------------------------------------------------------
# Pass 2: elementwise BatchNorm affine + SiLU.
# ---------------------------------------------------------------------------
def _bn_silu_kernel(y_ref, scale_ref, shift_ref, o_ref):
    z = y_ref[...] * scale_ref[...] + shift_ref[...]
    o_ref[...] = z * jax.nn.sigmoid(z)


def single_conv_fwd(x_nhwc, w_oihw, gamma, beta, *, k=3, p=1, s=1):
    """One single_conv block. x_nhwc: (N,H,W,Cin), w_oihw: (Cout,Cin,k,k)."""
    assert s == 1, "kernel written for stride=1 (module default)"
    N, H, W, Cin = x_nhwc.shape
    Cout = w_oihw.shape[0]

    # --- JAX glue: zero-pad + im2col; column order along K is (kh, kw, cin). ---
    xp = jnp.pad(x_nhwc, ((0, 0), (p, p), (p, p), (0, 0)))
    patches = jnp.concatenate(
        [xp[:, i:i + H, j:j + W, :] for i in range(k) for j in range(k)], axis=-1
    )  # (N, H, W, k*k*Cin)

    M = N * H * W
    K = k * k * Cin
    Mp = _round_up(M, TM)
    Kp = _round_up(K, LANE)
    Cp = _round_up(Cout, LANE)
    n_tiles = Mp // TM

    # bf16 MXU operands; zero padding keeps the matmul and the batch stats exact.
    pmat = patches.reshape(M, K).astype(jnp.bfloat16)
    pmat = jnp.pad(pmat, ((0, Mp - M), (0, Kp - K)))
    # (Cout,Cin,kh,kw) -> (kh,kw,Cin,Cout) -> (K, Cout) matching im2col ordering.
    wmat = jnp.transpose(w_oihw, (2, 3, 1, 0)).reshape(K, Cout).astype(jnp.bfloat16)
    wmat = jnp.pad(wmat, ((0, Kp - K), (0, Cp - Cout)))

    cost1 = pl.CostEstimate(
        flops=2 * Mp * Kp * Cp,
        transcendentals=0,
        bytes_accessed=Mp * Kp * 2 + Kp * Cp * 2 + Mp * Cp * 4 + 2 * Cp * 4,
    )

    y, ssum, ssq = pl.pallas_call(
        _conv_stats_kernel,
        out_shape=(
            jax.ShapeDtypeStruct((Mp, Cp), jnp.float32),
            jax.ShapeDtypeStruct((1, Cp), jnp.float32),
            jax.ShapeDtypeStruct((1, Cp), jnp.float32),
        ),
        grid=(n_tiles,),
        in_specs=[
            pl.BlockSpec((TM, Kp), lambda i: (i, 0)),   # streamed patch tiles
            pl.BlockSpec((Kp, Cp), lambda i: (0, 0)),   # weights stay resident
        ],
        out_specs=(
            pl.BlockSpec((TM, Cp), lambda i: (i, 0)),   # streamed conv output
            pl.BlockSpec((1, Cp), lambda i: (0, 0)),    # resident sum accumulator
            pl.BlockSpec((1, Cp), lambda i: (0, 0)),    # resident sumsq accumulator
        ),
        compiler_params=pltpu.CompilerParams(dimension_semantics=("arbitrary",)),
        cost_estimate=cost1,
    )(pmat, wmat)

    # --- tiny per-channel finalize in plain JAX (divide by the true M) ---
    mean = ssum / M
    var = jnp.maximum(ssq / M - mean * mean, 0.0)
    g = jnp.pad(gamma.astype(jnp.float32), (0, Cp - Cout)).reshape(1, Cp)
    b = jnp.pad(beta.astype(jnp.float32), (0, Cp - Cout)).reshape(1, Cp)
    scale = g * lax.rsqrt(var + BN_EPS)
    shift = b - mean * scale

    cost2 = pl.CostEstimate(
        flops=4 * Mp * Cp,
        transcendentals=Mp * Cp,
        bytes_accessed=2 * Mp * Cp * 4 + 2 * Cp * 4,
    )

    out = pl.pallas_call(
        _bn_silu_kernel,
        out_shape=jax.ShapeDtypeStruct((Mp, Cp), jnp.float32),
        grid=(n_tiles,),
        in_specs=[
            pl.BlockSpec((TM, Cp), lambda i: (i, 0)),
            pl.BlockSpec((1, Cp), lambda i: (0, 0)),
            pl.BlockSpec((1, Cp), lambda i: (0, 0)),
        ],
        out_specs=pl.BlockSpec((TM, Cp), lambda i: (i, 0)),
        compiler_params=pltpu.CompilerParams(dimension_semantics=("parallel",)),
        cost_estimate=cost2,
    )(y, scale, shift)

    return out[:M, :Cout].reshape(N, H, W, Cout)


def init_double_conv_params(key, ch_in, ch_out, k=3):
    """Matches the module: kaiming_normal(fan_out, relu) conv weights (bias=False),
    BN gamma=1 / beta=0."""
    k1, k2 = jax.random.split(key, 2)

    def conv_w(kk, cin, cout):
        fan_out = cout * k * k
        std = math.sqrt(2.0 / fan_out)
        return jax.random.normal(kk, (cout, cin, k, k), dtype=jnp.float32) * std

    return {
        "w1": conv_w(k1, ch_in, ch_out),
        "g1": jnp.ones((ch_out,), jnp.float32),
        "b1": jnp.zeros((ch_out,), jnp.float32),
        "w2": conv_w(k2, ch_out, ch_out),
        "g2": jnp.ones((ch_out,), jnp.float32),
        "b2": jnp.zeros((ch_out,), jnp.float32),
    }


def double_conv_forward(x_nchw, params):
    # NCHW (PyTorch) -> NHWC (kernel layout)
    x = jnp.transpose(x_nchw, (0, 2, 3, 1))
    x = single_conv_fwd(x, params["w1"], params["g1"], params["b1"])
    x = single_conv_fwd(x, params["w2"], params["g2"], params["b2"])
    # back to NCHW
    return jnp.transpose(x, (0, 3, 1, 2))


def _reference_double_conv(x_nchw, params):
    """Pure-JAX f32 reference (training-mode BN) for a loose sanity check."""
    def block(x, w, g, b):
        y = lax.conv_general_dilated(
            x, w, window_strides=(1, 1), padding=((1, 1), (1, 1)),
            dimension_numbers=("NCHW", "OIHW", "NCHW"))
        mean = jnp.mean(y, axis=(0, 2, 3), keepdims=True)
        var = jnp.mean((y - mean) ** 2, axis=(0, 2, 3), keepdims=True)
        z = (y - mean) * lax.rsqrt(var + BN_EPS) * g.reshape(1, -1, 1, 1) \
            + b.reshape(1, -1, 1, 1)
        return z * jax.nn.sigmoid(z)

    x = block(x_nchw, params["w1"], params["g1"], params["b1"])
    return block(x, params["w2"], params["g2"], params["b2"])


if __name__ == "__main__":
    key = jax.random.PRNGKey(0)
    kx, kp = jax.random.split(key)

    N, CH_IN, H, W = 2, 4, 16, 16
    CH_OUT = 8

    x = jax.random.normal(kx, (N, CH_IN, H, W), dtype=jnp.float32)
    params = init_double_conv_params(kp, CH_IN, CH_OUT)

    out = jax.jit(double_conv_forward)(x, params)
    out = jax.block_until_ready(out)

    assert out.shape == (N, CH_OUT, H, W), out.shape
    assert bool(jnp.all(jnp.isfinite(out)))

    # Loose tolerance check vs. f32 reference (kernel matmuls run in bf16).
    ref = _reference_double_conv(x, params)
    max_err = float(jnp.max(jnp.abs(out - ref)))
    assert max_err < 0.2, max_err

    print("KERNEL_OK")
</pallas_src>

<mosaic_0001>
module attributes {stable_mosaic.version = 11 : i64} {
  func.func @_conv_stats_kernel(%arg0: i32, %arg1: memref<256x128xbf16, #tpu.memory_space<vmem>>, %arg2: memref<128x128xbf16, #tpu.memory_space<vmem>>, %arg3: memref<256x128xf32, #tpu.memory_space<vmem>>, %arg4: memref<1x128xf32, #tpu.memory_space<vmem>>, %arg5: memref<1x128xf32, #tpu.memory_space<vmem>>) attributes {dimension_semantics = [#tpu.dimension_semantics<arbitrary>], iteration_bounds = array<i64: 2>, scalar_prefetch = 0 : i64, scratch_operands = 0 : i64, tpu.core_type = #tpu.core_type<tc>, window_params = [{transform_indices = @transform_0, window_bounds = array<i64: 256, 128>}, {pipeline_mode = #tpu.pipeline_mode<synchronous>, transform_indices = @transform_1, window_bounds = array<i64: 128, 128>}, {transform_indices = @transform_2, window_bounds = array<i64: 256, 128>}, {pipeline_mode = #tpu.pipeline_mode<synchronous>, transform_indices = @transform_3, window_bounds = array<i64: 1, 128>}, {pipeline_mode = #tpu.pipeline_mode<synchronous>, transform_indices = @transform_4, window_bounds = array<i64: 1, 128>}]} {
    %c0 = arith.constant 0 : index
    %c0_0 = arith.constant 0 : index
    %0 = vector.load %arg1[%c0, %c0_0] : memref<256x128xbf16, #tpu.memory_space<vmem>>, vector<256x128xbf16>
    %c0_1 = arith.constant 0 : index
    %c0_2 = arith.constant 0 : index
    %1 = vector.load %arg2[%c0_1, %c0_2] : memref<128x128xbf16, #tpu.memory_space<vmem>>, vector<128x128xbf16>
    %cst = arith.constant dense<0.000000e+00> : vector<256x128xf32>
    %2 = tpu.matmul %0, %1, %cst {dimension_numbers = #tpu.dot_dimension_numbers<[1], [0], [0], [1], [0, 0, 1, 1], [], []>} : vector<256x128xbf16>, vector<128x128xbf16>, vector<256x128xf32> -> vector<256x128xf32>
    %c0_3 = arith.constant 0 : index
    %c0_4 = arith.constant 0 : index
    %3 = vector.load %arg3[%c0_3, %c0_4] : memref<256x128xf32, #tpu.memory_space<vmem>>, vector<256x128xf32>
    tpu.vector_store %arg3[%c0_3, %c0_4], %2 {strides = array<i32>} : memref<256x128xf32, #tpu.memory_space<vmem>>, vector<256x128xf32>,
    %c0_i32 = arith.constant 0 : i32
    %4 = arith.cmpi eq, %arg0, %c0_i32 : i32
    %5 = arith.extui %4 : i1 to i32
    %c0_i32_5 = arith.constant 0 : i32
    %6 = arith.cmpi ne, %5, %c0_i32_5 : i32
    scf.if %6 {
      %cst_16 = arith.constant 0.000000e+00 : f32
      %18 = vector.broadcast %cst_16 : f32 to vector<1x128xf32>
      %c0_17 = arith.constant 0 : index
      %c0_18 = arith.constant 0 : index
      %19 = vector.load %arg4[%c0_17, %c0_18] : memref<1x128xf32, #tpu.memory_space<vmem>>, vector<1x128xf32>
      tpu.vector_store %arg4[%c0_17, %c0_18], %18 {strides = array<i32>} : memref<1x128xf32, #tpu.memory_space<vmem>>, vector<1x128xf32>,
      %cst_19 = arith.constant 0.000000e+00 : f32
      %20 = vector.broadcast %cst_19 : f32 to vector<1x128xf32>
      %c0_20 = arith.constant 0 : index
      %c0_21 = arith.constant 0 : index
      %21 = vector.load %arg5[%c0_20, %c0_21] : memref<1x128xf32, #tpu.memory_space<vmem>>, vector<1x128xf32>
      tpu.vector_store %arg5[%c0_20, %c0_21], %20 {strides = array<i32>} : memref<1x128xf32, #tpu.memory_space<vmem>>, vector<1x128xf32>,
    } else {
    }
    %c0_6 = arith.constant 0 : index
    %c0_7 = arith.constant 0 : index
    %7 = vector.load %arg4[%c0_6, %c0_7] : memref<1x128xf32, #tpu.memory_space<vmem>>, vector<1x128xf32>
    %cst_8 = arith.constant dense<0.000000e+00> : vector<128xf32>
    %8 = vector.multi_reduction <add>, %2, %cst_8 [0] : vector<256x128xf32> to vector<128xf32>
    %9 = vector.shape_cast %8 : vector<128xf32> to vector<1x128xf32>
    %10 = arith.addf %7, %9 : vector<1x128xf32>
    %c0_9 = arith.constant 0 : index
    %c0_10 = arith.constant 0 : index
    %11 = vector.load %arg4[%c0_9, %c0_10] : memref<1x128xf32, #tpu.memory_space<vmem>>, vector<1x128xf32>
    tpu.vector_store %arg4[%c0_9, %c0_10], %10 {strides = array<i32>} : memref<1x128xf32, #tpu.memory_space<vmem>>, vector<1x128xf32>,
    %c0_11 = arith.constant 0 : index
    %c0_12 = arith.constant 0 : index
    %12 = vector.load %arg5[%c0_11, %c0_12] : memref<1x128xf32, #tpu.memory_space<vmem>>, vector<1x128xf32>
    %13 = arith.mulf %2, %2 : vector<256x128xf32>
    %cst_13 = arith.constant dense<0.000000e+00> : vector<128xf32>
    %14 = vector.multi_reduction <add>, %13, %cst_13 [0] : vector<256x128xf32> to vector<128xf32>
    %15 = vector.shape_cast %14 : vector<128xf32> to vector<1x128xf32>
    %16 = arith.addf %12, %15 : vector<1x128xf32>
    %c0_14 = arith.constant 0 : index
    %c0_15 = arith.constant 0 : index
    %17 = vector.load %arg5[%c0_14, %c0_15] : memref<1x128xf32, #tpu.memory_space<vmem>>, vector<1x128xf32>
    tpu.vector_store %arg5[%c0_14, %c0_15], %16 {strides = array<i32>} : memref<1x128xf32, #tpu.memory_space<vmem>>, vector<1x128xf32>,
    return
  }
  func.func @transform_0(%arg0: i32) -> (i32, i32) {
    %c0_i32 = arith.constant 0 : i32
    %c0_i32_0 = arith.constant 0 : i32
    return %arg0, %c0_i32 : i32, i32
  }
  func.func @transform_1(%arg0: i32) -> (i32, i32) {
    %c0_i32 = arith.constant 0 : i32
    %c0_i32_0 = arith.constant 0 : i32
    %c0_i32_1 = arith.constant 0 : i32
    return %c0_i32, %c0_i32_0 : i32, i32
  }
  func.func @transform_2(%arg0: i32) -> (i32, i32) {
    %c0_i32 = arith.constant 0 : i32
    %c0_i32_0 = arith.constant 0 : i32
    return %arg0, %c0_i32 : i32, i32
  }
  func.func @transform_3(%arg0: i32) -> (i32, i32) {
    %c0_i32 = arith.constant 0 : i32
    %c0_i32_0 = arith.constant 0 : i32
    %c0_i32_1 = arith.constant 0 : i32
    return %c0_i32, %c0_i32_0 : i32, i32
  }
  func.func @transform_4(%arg0: i32) -> (i32, i32) {
    %c0_i32 = arith.constant 0 : i32
    %c0_i32_0 = arith.constant 0 : i32
    %c0_i32_1 = arith.constant 0 : i32
    return %c0_i32, %c0_i32_0 : i32, i32
  }
}

module attributes {stable_mosaic.version = 11 : i64} {
  func.func @_bn_silu_kernel(%arg0: i32, %arg1: memref<256x128xf32, #tpu.memory_space<vmem>>, %arg2: memref<1x128xf32, #tpu.memory_space<vmem>>, %arg3: memref<1x128xf32, #tpu.memory_space<vmem>>, %arg4: memref<256x128xf32, #tpu.memory_space<vmem>>) attributes {dimension_semantics = [#tpu.dimension_semantics<parallel>], iteration_bounds = array<i64: 2>, scalar_prefetch = 0 : i64, scratch_operands = 0 : i64, tpu.core_type = #tpu.core_type<tc>, window_params = [{transform_indices = @transform_0, window_bounds = array<i64: 256, 128>}, {pipeline_mode = #tpu.pipeline_mode<synchronous>, transform_indices = @transform_1, window_bounds = array<i64: 1, 128>}, {pipeline_mode = #tpu.pipeline_mode<synchronous>, transform_indices = @transform_2, window_bounds = array<i64: 1, 128>}, {transform_indices = @transform_3, window_bounds = array<i64: 256, 128>}]} {
    %c0 = arith.constant 0 : index
    %c0_0 = arith.constant 0 : index
    %0 = vector.load %arg1[%c0, %c0_0] : memref<256x128xf32, #tpu.memory_space<vmem>>, vector<256x128xf32>
    %c0_1 = arith.constant 0 : index
    %c0_2 = arith.constant 0 : index
    %1 = vector.load %arg2[%c0_1, %c0_2] : memref<1x128xf32, #tpu.memory_space<vmem>>, vector<1x128xf32>
    %2 = vector.broadcast %1 : vector<1x128xf32> to vector<256x128xf32>
    %3 = arith.mulf %0, %2 : vector<256x128xf32>
    %c0_3 = arith.constant 0 : index
    %c0_4 = arith.constant 0 : index
    %4 = vector.load %arg3[%c0_3, %c0_4] : memref<1x128xf32, #tpu.memory_space<vmem>>, vector<1x128xf32>
    %5 = vector.broadcast %4 : vector<1x128xf32> to vector<256x128xf32>
    %6 = arith.addf %3, %5 : vector<256x128xf32>
    %7 = arith.negf %6 : vector<256x128xf32>
    %8 = math.exp %7 : vector<256x128xf32>
    %cst = arith.constant 1.000000e+00 : f32
    %9 = vector.broadcast %cst : f32 to vector<256x128xf32>
    %10 = arith.addf %9, %8 : vector<256x128xf32>
    %11 = arith.divf %9, %10 : vector<256x128xf32>
    %12 = arith.mulf %6, %11 : vector<256x128xf32>
    %c0_5 = arith.constant 0 : index
    %c0_6 = arith.constant 0 : index
    %13 = vector.load %arg4[%c0_5, %c0_6] : memref<256x128xf32, #tpu.memory_space<vmem>>, vector<256x128xf32>
    tpu.vector_store %arg4[%c0_5, %c0_6], %12 {strides = array<i32>} : memref<256x128xf32, #tpu.memory_space<vmem>>, vector<256x128xf32>,
    return
  }
  func.func @transform_0(%arg0: i32) -> (i32, i32) {
    %c0_i32 = arith.constant 0 : i32
    %c0_i32_0 = arith.constant 0 : i32
    return %arg0, %c0_i32 : i32, i32
  }
  func.func @transform_1(%arg0: i32) -> (i32, i32) {
    %c0_i32 = arith.constant 0 : i32
    %c0_i32_0 = arith.constant 0 : i32
    %c0_i32_1 = arith.constant 0 : i32
    return %c0_i32, %c0_i32_0 : i32, i32
  }
  func.func @transform_2(%arg0: i32) -> (i32, i32) {
    %c0_i32 = arith.constant 0 : i32
    %c0_i32_0 = arith.constant 0 : i32
    %c0_i32_1 = arith.constant 0 : i32
    return %c0_i32, %c0_i32_0 : i32, i32
  }
  func.func @transform_3(%arg0: i32) -> (i32, i32) {
    %c0_i32 = arith.constant 0 : i32
    %c0_i32_0 = arith.constant 0 : i32
    return %arg0, %c0_i32 : i32, i32
  }
}

</mosaic_0001>

<llo_original>
// kernel: double_conv_forward.5
$region0: #{double_conv_forward.5}
  #allocation0 [shape = 'u32[]', space=smem, size = 0x4, offset = 0x4, fixed_abs, tag = 'smem constant byte address 0x4 - core index']
  #allocation1 [shape = 'u32[144,128]{1,0:T(1,128)}', space=vmem, size = 0x12000, scoped, tag = 'internal scratch']
  %s0 = inlined_call_operand.vmem [shape: f32[512,128], index: 0, kind: input, shape index: {}]
  %s1 = inlined_call_operand.vmem [shape: f32[1,128], index: 1, kind: input, shape index: {}]
  %s2 = inlined_call_operand.vmem [shape: f32[1,128], index: 2, kind: input, shape index: {}]
  %s3 = inlined_call_operand.vmem [shape: f32[512,128], index: 3, kind: output, shape index: {}]
  %s4 = sld [smem:[#allocation0]]
  $region45: #{double_conv_forward.5} parent=0
    _
  %s6 = ssub.s32 1, %s4
  %s7 = scalar_select 0, %s6, %s4
  loop: start=0, step=1, limit=4
  $region2: #{double_conv_forward.5} parent=0 // loop_pre_header
    _
  $region3: #{double_conv_forward.5} parent=0 // loop_header
    %s9 = sphi 0, %s13
    %p10 = scmp.ge.s32.totalorder %s9, 4
    %s19 = sphi 0, %s21
    %s22 = sphi 0, %s19
    %s23 = sphi 0, %s22
    %s39 = sphi 0, %s23
    %s43 = sphi 0, %s43
    %s45 = sphi 0, %s43
    %s46 = sphi 0, %s45
    %s60 = sphi 0, %s46
    %s64 = sphi 0, %s64
    %s66 = sphi 0, %s64
    %s67 = sphi 0, %s66
    %s81 = sphi 0, %s67
    %s87 = sphi 0, %s89
    %s90 = sphi 0, %s87
    %s91 = sphi 0, %s90
    %s107 = sphi 0, %s91
  $region4: #{double_conv_forward.5} parent=0 // loop_header_branch
    %12 = sbr.rel (%p10) target = $region8
  $region5: #{double_conv_forward.5} parent=0 // loop_body
    %s14 = ssub.s32 %s9, 1
    %s15 = ssub.s32 %s9, 2
    %s16 = sadd.s32 %s9, 1
    %s17 = ssub.s32 %s9, %s16
    %p18 = scmp.eq.s32.totalorder %s17, 0
    %s20 = sadd.s32 %s19, 1
    %s21 = scalar_select %p18, %s19, %s20
    %p24 = pneg %p18
    %p25 = scmp.eq.s32.totalorder %s9, 1
    %p26 = por %p24, %p25
    %p27 = scmp.ne.s32.totalorder %s19, %s22
    %p28 = scmp.eq.s32.totalorder %s9, 0
    %p29 = por %p27, %p28
    %p30 = scmp.ne.s32.totalorder %s19, %s22
    %p31 = scmp.eq.s32.totalorder %s14, 1
    %p32 = por %p30, %p31
    %p33 = scmp.ne.s32.totalorder %s22, %s23
    %p34 = scmp.eq.s32.totalorder %s14, 0
    %p35 = por %p33, %p34
    %p36 = scmp.ne.s32.totalorder %s22, %s23
    %p37 = scmp.eq.s32.totalorder %s15, 1
    %p38 = por %p36, %p37
    %p40 = scmp.ne.s32.totalorder %s23, %s39
    %p41 = scmp.eq.s32.totalorder %s15, 0
    %p42 = por %p40, %p41
    %s44 = sadd.s32 %s43, 1
    %p47 = scmp.eq.s32.totalorder %s9, 1
    %p48 = scmp.ne.s32.totalorder %s43, %s45
    %p49 = scmp.eq.s32.totalorder %s9, 0
    %p50 = por %p48, %p49
    %p51 = scmp.ne.s32.totalorder %s43, %s45
    %p52 = scmp.eq.s32.totalorder %s14, 1
    %p53 = por %p51, %p52
    %p54 = scmp.ne.s32.totalorder %s45, %s46
    %p55 = scmp.eq.s32.totalorder %s14, 0
    %p56 = por %p54, %p55
    %p57 = scmp.ne.s32.totalorder %s45, %s46
    %p58 = scmp.eq.s32.totalorder %s15, 1
    %p59 = por %p57, %p58
    %p61 = scmp.ne.s32.totalorder %s46, %s60
    %p62 = scmp.eq.s32.totalorder %s15, 0
    %p63 = por %p61, %p62
    %s65 = sadd.s32 %s64, 1
    %p68 = scmp.eq.s32.totalorder %s9, 1
    %p69 = scmp.ne.s32.totalorder %s64, %s66
    %p70 = scmp.eq.s32.totalorder %s9, 0
    %p71 = por %p69, %p70
    %p72 = scmp.ne.s32.totalorder %s64, %s66
    %p73 = scmp.eq.s32.totalorder %s14, 1
    %p74 = por %p72, %p73
    %p75 = scmp.ne.s32.totalorder %s66, %s67
    %p76 = scmp.eq.s32.totalorder %s14, 0
    %p77 = por %p75, %p76
    %p78 = scmp.ne.s32.totalorder %s66, %s67
    %p79 = scmp.eq.s32.totalorder %s15, 1
    %p80 = por %p78, %p79
    %p82 = scmp.ne.s32.totalorder %s67, %s81
    %p83 = scmp.eq.s32.totalorder %s15, 0
    %p84 = por %p82, %p83
    %s85 = ssub.s32 %s9, %s16
    %p86 = scmp.eq.s32.totalorder %s85, 0
    %s88 = sadd.s32 %s87, 1
    %s89 = scalar_select %p86, %s87, %s88
    %p92 = pneg %p86
    %p93 = scmp.eq.s32.totalorder %s9, 1
    %p94 = por %p92, %p93
    %p95 = scmp.ne.s32.totalorder %s87, %s90
    %p96 = scmp.eq.s32.totalorder %s9, 0
    %p97 = por %p95, %p96
    %p98 = scmp.ne.s32.totalorder %s87, %s90
    %p99 = scmp.eq.s32.totalorder %s14, 1
    %p100 = por %p98, %p99
    %p101 = scmp.ne.s32.totalorder %s90, %s91
    %p102 = scmp.eq.s32.totalorder %s14, 0
    %p103 = por %p101, %p102
    %p104 = scmp.ne.s32.totalorder %s90, %s91
    %p105 = scmp.eq.s32.totalorder %s15, 1
    %p106 = por %p104, %p105
    %p108 = scmp.ne.s32.totalorder %s91, %s107
    %p109 = scmp.eq.s32.totalorder %s15, 0
    %p110 = por %p108, %p109
    %p111 = scmp.le.s32.totalorder 1, %s9
    %p112 = scmp.lt.s32.totalorder %s9, 3
    %p113 = pnand %p111, %p112
    %p114 = pneg %p113
    // Predicated region
    $region9: #{double_conv_forward.5} parent=5 // pred_check
      _
    $region10: #{double_conv_forward.5} parent=5 // pred_check_branch
      %116 = sbr.rel (%p113) target = $region12
    $region11: #{double_conv_forward.5} parent=5 // pred_region
      %s117 = ssub.s32 %s9, 1
      // Predicated region
      $region13: #{double_conv_forward.5} parent=11 // pred_check
        %p118 = pneg %p56
      $region14: #{double_conv_forward.5} parent=11 // pred_check_branch
        %120 = sbr.rel (%p118) target = $region16
      $region15: #{double_conv_forward.5} parent=11 // pred_region
        _
      $region16: #{double_conv_forward.5} parent=11 // pred_fallthru
        _
      // Predicated region
      $region17: #{double_conv_forward.5} parent=11 // pred_check
        %p121 = pneg %p77
      $region18: #{double_conv_forward.5} parent=11 // pred_check_branch
        %123 = sbr.rel (%p121) target = $region20
      $region19: #{double_conv_forward.5} parent=11 // pred_region
        _
      $region20: #{double_conv_forward.5} parent=11 // pred_fallthru
        _
    $region12: #{double_conv_forward.5} parent=5 // pred_fallthru
      _
    %p124 = scmp.lt.s32.totalorder %s9, 2
    // Predicated region
    $region21: #{double_conv_forward.5} parent=5 // pred_check
      %p125 = pneg %p124
    $region22: #{double_conv_forward.5} parent=5 // pred_check_branch
      %127 = sbr.rel (%p125) target = $region24
    $region23: #{double_conv_forward.5} parent=5 // pred_region
      // Predicated region
      $region25: #{double_conv_forward.5} parent=23 // pred_check
        %p128 = pneg %p29
      $region26: #{double_conv_forward.5} parent=23 // pred_check_branch
        %130 = sbr.rel (%p128) target = $region28
      $region27: #{double_conv_forward.5} parent=23 // pred_region
        %s131 = smul.u32 32, %s9
        %p132 = scmp.lt.s32.totalorder %s131, 63
        %s133 = scalar_select %p132, %s131, 63
        %s134 = smul.addr %s133, 8
        %s135 = scalar_lea.vmem %s0, %s134
        %s136 = smul.u32 32, %s9
      $region28: #{double_conv_forward.5} parent=23 // pred_fallthru
        _
    $region24: #{double_conv_forward.5} parent=5 // pred_fallthru
      _
    %p137 = scmp.le.s32.totalorder 1, %s9
    %p138 = scmp.lt.s32.totalorder %s9, 3
    %p139 = pnand %p137, %p138
    %p140 = pneg %p139
    // Predicated region
    $region29: #{double_conv_forward.5} parent=5 // pred_check
      _
    $region30: #{double_conv_forward.5} parent=5 // pred_check_branch
      %142 = sbr.rel (%p139) target = $region32
    $region31: #{double_conv_forward.5} parent=5 // pred_region
      %s143 = ssub.s32 %s9, 1
      %s144 = smul.u32 32, %s14
      %p145 = scmp.lt.s32.totalorder %s144, 63
      %s146 = scalar_select %p145, %s144, 63
      %s147 = smul.addr %s146, 8
      %s148 = scalar_lea.vmem %s0, %s147
      %p149 = pneg %p35
      %p150 = pneg %p32
      %p151 = pneg %p56
      %p152 = pneg %p53
      %p153 = pneg %p77
      %p154 = pneg %p74
      %p155 = pneg %p103
      %p156 = pneg %p100
      %s157 = smul.u32 32, %s14
      %p158 = scmp.lt.s32.totalorder %s157, 63
      %s159 = scalar_select %p158, %s157, 63
      %s160 = smul.addr %s159, 8
      %s161 = scalar_lea.vmem %s3, %s160
      %s162 = smul.u32 32, %s14
      %p163 = scmp.lt.s32.totalorder %s162, 63
      %s164 = scalar_select %p163, %s162, 63
      %s165 = smul.addr %s164, 8
      %s166 = scalar_lea.vmem %s0, %s165
      %s167 = smul.u32 32, %s14
      %s168 = smul.u32 32, %s14
      %p169 = scmp.lt.s32.totalorder %s168, 63
      %s170 = scalar_select %p169, %s168, 63
      %s171 = smul.addr %s170, 8
      %s172 = scalar_lea.vmem %s3, %s171
      %s173 = smul.u32 32, %s14
      %v174 = vld [vmem:[%s166] sm:$0xff]
      %v175 = vld [vmem:[%s166 + $0x8] sm:$0xff]
      %v176 = vld [vmem:[%s166 + $0x10] sm:$0xff]
      %v177 = vld [vmem:[%s166 + $0x18] sm:$0xff]
      %v178 = vld [vmem:[%s166 + $0x20] sm:$0xff]
      %v179 = vld [vmem:[%s166 + $0x28] sm:$0xff]
      %v180 = vld [vmem:[%s166 + $0x30] sm:$0xff]
      %v181 = vld [vmem:[%s166 + $0x38] sm:$0xff]
      %v182 = vld [vmem:[%s166 + $0x40] sm:$0xff]
      %v183 = vld [vmem:[%s166 + $0x48] sm:$0xff]
      %v184 = vld [vmem:[%s166 + $0x50] sm:$0xff]
      %v185 = vld [vmem:[%s166 + $0x58] sm:$0xff]
      %v186 = vld [vmem:[%s166 + $0x60] sm:$0xff]
      %v187 = vld [vmem:[%s166 + $0x68] sm:$0xff]
      %v188 = vld [vmem:[%s166 + $0x70] sm:$0xff]
      %v189 = vld [vmem:[%s166 + $0x78] sm:$0xff]
      %v190 = vld [vmem:[%s166 + $0x80] sm:$0xff]
      %v191 = vld [vmem:[%s166 + $0x88] sm:$0xff]
      %v192 = vld [vmem:[%s166 + $0x90] sm:$0xff]
      %v193 = vld [vmem:[%s166 + $0x98] sm:$0xff]
      %v194 = vld [vmem:[%s166 + $0xa0] sm:$0xff]
      %v195 = vld [vmem:[%s166 + $0xa8] sm:$0xff]
      %v196 = vld [vmem:[%s166 + $0xb0] sm:$0xff]
      %v197 = vld [vmem:[%s166 + $0xb8] sm:$0xff]
      %v198 = vld [vmem:[%s166 + $0xc0] sm:$0xff]
      %v199 = vld [vmem:[%s166 + $0xc8] sm:$0xff]
      %v200 = vld [vmem:[%s166 + $0xd0] sm:$0xff]
      %v201 = vld [vmem:[%s166 + $0xd8] sm:$0xff]
      %v202 = vld [vmem:[%s166 + $0xe0] sm:$0xff]
      %v203 = vld [vmem:[%s166 + $0xe8] sm:$0xff]
      %v204 = vld [vmem:[%s166 + $0xf0] sm:$0xff]
      %v205 = vld [vmem:[%s166 + $0xf8] sm:$0xff]
      %v206 = vld [vmem:[%s1] sm:$0x1]
      %v208 = vlaneseq
      %v209 = vshrl.u32 %v208, 7
      %v210 = vsub.s32 0, %v209
      %v211 = vrot.slane %v206, %v210
      %v213 = vmul.f32 %v174, %v211
      %v214 = vmul.f32 %v175, %v211
      %v215 = vmul.f32 %v176, %v211
      %v216 = vmul.f32 %v177, %v211
      %v217 = vmul.f32 %v178, %v211
      %v218 = vmul.f32 %v179, %v211
      %v219 = vmul.f32 %v180, %v211
      %v220 = vmul.f32 %v181, %v211
      %v221 = vmul.f32 %v182, %v211
      %v222 = vmul.f32 %v183, %v211
      %v223 = vmul.f32 %v184, %v211
      %v224 = vmul.f32 %v185, %v211
      %v225 = vmul.f32 %v186, %v211
      %v226 = vmul.f32 %v187, %v211
      %v227 = vmul.f32 %v188, %v211
      %v228 = vmul.f32 %v189, %v211
      %v229 = vmul.f32 %v190, %v211
      %v230 = vmul.f32 %v191, %v211
      %v231 = vmul.f32 %v192, %v211
      %v232 = vmul.f32 %v193, %v211
      %v233 = vmul.f32 %v194, %v211
      %v234 = vmul.f32 %v195, %v211
      %v235 = vmul.f32 %v196, %v211
      %v236 = vmul.f32 %v197, %v211
      %v237 = vmul.f32 %v198, %v211
      %v238 = vmul.f32 %v199, %v211
      %v239 = vmul.f32 %v200, %v211
      %v240 = vmul.f32 %v201, %v211
      %v241 = vmul.f32 %v202, %v211
      %v242 = vmul.f32 %v203, %v211
      %v243 = vmul.f32 %v204, %v211
      %v244 = vmul.f32 %v205, %v211
      %v245 = vld [vmem:[%s2] sm:$0x1]
      %v247 = vlaneseq
      %v248 = vshrl.u32 %v247, 7
      %v249 = vsub.s32 0, %v248
      %v250 = vrot.slane %v245, %v249
      %v252 = vadd.f32 %v213, %v250
      %v253 = vadd.f32 %v214, %v250
      %v254 = vadd.f32 %v215, %v250
      %v255 = vadd.f32 %v216, %v250
      %v256 = vadd.f32 %v217, %v250
      %v257 = vadd.f32 %v218, %v250
      %v258 = vadd.f32 %v219, %v250
      %v259 = vadd.f32 %v220, %v250
      %v260 = vadd.f32 %v221, %v250
      %v261 = vadd.f32 %v222, %v250
      %v262 = vadd.f32 %v223, %v250
      %v263 = vadd.f32 %v224, %v250
      %v264 = vadd.f32 %v225, %v250
      %v265 = vadd.f32 %v226, %v250
      %v266 = vadd.f32 %v227, %v250
      %v267 = vadd.f32 %v228, %v250
      %v268 = vadd.f32 %v229, %v250
      %v269 = vadd.f32 %v230, %v250
      %v270 = vadd.f32 %v231, %v250
      %v271 = vadd.f32 %v232, %v250
      %v272 = vadd.f32 %v233, %v250
      %v273 = vadd.f32 %v234, %v250
      %v274 = vadd.f32 %v235, %v250
      %v275 = vadd.f32 %v236, %v250
      %v276 = vadd.f32 %v237, %v250
      %v277 = vadd.f32 %v238, %v250
      %v278 = vadd.f32 %v239, %v250
      %v279 = vadd.f32 %v240, %v250
      %v280 = vadd.f32 %v241, %v250
      %v281 = vadd.f32 %v242, %v250
      %v282 = vadd.f32 %v243, %v250
      %v283 = vadd.f32 %v244, %v250
      %v284 = vxor.u32 %v252, 2147483648
      %v285 = vxor.u32 %v253, 2147483648
      %v286 = vxor.u32 %v254, 2147483648
      %v287 = vxor.u32 %v255, 2147483648
      %v288 = vxor.u32 %v256, 2147483648
      %v289 = vxor.u32 %v257, 2147483648
      %v290 = vxor.u32 %v258, 2147483648
      %v291 = vxor.u32 %v259, 2147483648
      %v292 = vxor.u32 %v260, 2147483648
      %v293 = vxor.u32 %v261, 2147483648
      %v294 = vxor.u32 %v262, 2147483648
      %v295 = vxor.u32 %v263, 2147483648
      %v296 = vxor.u32 %v264, 2147483648
      %v297 = vxor.u32 %v265, 2147483648
      %v298 = vxor.u32 %v266, 2147483648
      %v299 = vxor.u32 %v267, 2147483648
      %v300 = vxor.u32 %v268, 2147483648
      %v301 = vxor.u32 %v269, 2147483648
      %v302 = vxor.u32 %v270, 2147483648
      %v303 = vxor.u32 %v271, 2147483648
      %v304 = vxor.u32 %v272, 2147483648
      %v305 = vxor.u32 %v273, 2147483648
      %v306 = vxor.u32 %v274, 2147483648
      %v307 = vxor.u32 %v275, 2147483648
      %v308 = vxor.u32 %v276, 2147483648
      %v309 = vxor.u32 %v277, 2147483648
      %v310 = vxor.u32 %v278, 2147483648
      %v311 = vxor.u32 %v279, 2147483648
      %v312 = vxor.u32 %v280, 2147483648
      %v313 = vxor.u32 %v281, 2147483648
      %v314 = vxor.u32 %v282, 2147483648
      %v315 = vxor.u32 %v283, 2147483648
      %v316 = vmul.f32 %v284, 1.442695
      %v317 = vpow.pop %v316
      %v318 = vmul.f32 %v285, 1.442695
      %v319 = vpow.pop %v318
      %v320 = vmul.f32 %v286, 1.442695
      %v321 = vpow.pop %v320
      %v322 = vmul.f32 %v287, 1.442695
      %v323 = vpow.pop %v322
      %v324 = vmul.f32 %v288, 1.442695
      %v325 = vpow.pop %v324
      %v326 = vmul.f32 %v289, 1.442695
      %v327 = vpow.pop %v326
      %v328 = vmul.f32 %v290, 1.442695
      %v329 = vpow.pop %v328
      %v330 = vmul.f32 %v291, 1.442695
      %v331 = vpow.pop %v330
      %v332 = vmul.f32 %v292, 1.442695
      %v333 = vpow.pop %v332
      %v334 = vmul.f32 %v293, 1.442695
      %v335 = vpow.pop %v334
      %v336 = vmul.f32 %v294, 1.442695
      %v337 = vpow.pop %v336
      %v338 = vmul.f32 %v295, 1.442695
      %v339 = vpow.pop %v338
      %v340 = vmul.f32 %v296, 1.442695
      %v341 = vpow.pop %v340
      %v342 = vmul.f32 %v297, 1.442695
      %v343 = vpow.pop %v342
      %v344 = vmul.f32 %v298, 1.442695
      %v345 = vpow.pop %v344
      %v346 = vmul.f32 %v299, 1.442695
      %v347 = vpow.pop %v346
      %v348 = vmul.f32 %v300, 1.442695
      %v349 = vpow.pop %v348
      %v350 = vmul.f32 %v301, 1.442695
      %v351 = vpow.pop %v350
      %v352 = vmul.f32 %v302, 1.442695
      %v353 = vpow.pop %v352
      %v354 = vmul.f32 %v303, 1.442695
      %v355 = vpow.pop %v354
      %v356 = vmul.f32 %v304, 1.442695
      %v357 = vpow.pop %v356
      %v358 = vmul.f32 %v305, 1.442695
      %v359 = vpow.pop %v358
      %v360 = vmul.f32 %v306, 1.442695
      %v361 = vpow.pop %v360
      %v362 = vmul.f32 %v307, 1.442695
      %v363 = vpow.pop %v362
      %v364 = vmul.f32 %v308, 1.442695
      %v365 = vpow.pop %v364
      %v366 = vmul.f32 %v309, 1.442695
      %v367 = vpow.pop %v366
      %v368 = vmul.f32 %v310, 1.442695
      %v369 = vpow.pop %v368
      %v370 = vmul.f32 %v311, 1.442695
      %v371 = vpow.pop %v370
      %v372 = vmul.f32 %v312, 1.442695
      %v373 = vpow.pop %v372
      %v374 = vmul.f32 %v313, 1.442695
      %v375 = vpow.pop %v374
      %v376 = vmul.f32 %v314, 1.442695
      %v377 = vpow.pop %v376
      %v378 = vmul.f32 %v315, 1.442695
      %v379 = vpow.pop %v378
      %v380 = vadd.f32 %v317, 1.0
      %v381 = vadd.f32 %v319, 1.0
      %v382 = vadd.f32 %v321, 1.0
      %v383 = vadd.f32 %v323, 1.0
      %v384 = vadd.f32 %v325, 1.0
      %v385 = vadd.f32 %v327, 1.0
      %v386 = vadd.f32 %v329, 1.0
      %v387 = vadd.f32 %v331, 1.0
      %v388 = vadd.f32 %v333, 1.0
      %v389 = vadd.f32 %v335, 1.0
      %v390 = vadd.f32 %v337, 1.0
      %v391 = vadd.f32 %v339, 1.0
      %v392 = vadd.f32 %v341, 1.0
      %v393 = vadd.f32 %v343, 1.0
      %v394 = vadd.f32 %v345, 1.0
      %v395 = vadd.f32 %v347, 1.0
      %v396 = vadd.f32 %v349, 1.0
      %v397 = vadd.f32 %v351, 1.0
      %v398 = vadd.f32 %v353, 1.0
      %v399 = vadd.f32 %v355, 1.0
      %v400 = vadd.f32 %v357, 1.0
      %v401 = vadd.f32 %v359, 1.0
      %v402 = vadd.f32 %v361, 1.0
      %v403 = vadd.f32 %v363, 1.0
      %v404 = vadd.f32 %v365, 1.0
      %v405 = vadd.f32 %v367, 1.0
      %v406 = vadd.f32 %v369, 1.0
      %v407 = vadd.f32 %v371, 1.0
      %v408 = vadd.f32 %v373, 1.0
      %v409 = vadd.f32 %v375, 1.0
      %v410 = vadd.f32 %v377, 1.0
      %v411 = vadd.f32 %v379, 1.0
      %v412 = vrcp.pop %v380
      %v413 = vmul.f32 1.0, %v412
      %v414 = vrcp.pop %v381
      %v415 = vmul.f32 1.0, %v414
      %v416 = vrcp.pop %v382
      %v417 = vmul.f32 1.0, %v416
      %v418 = vrcp.pop %v383
      %v419 = vmul.f32 1.0, %v418
      %v420 = vrcp.pop %v384
      %v421 = vmul.f32 1.0, %v420
      %v422 = vrcp.pop %v385
      %v423 = vmul.f32 1.0, %v422
      %v424 = vrcp.pop %v386
      %v425 = vmul.f32 1.0, %v424
      %v426 = vrcp.pop %v387
      %v427 = vmul.f32 1.0, %v426
      %v428 = vrcp.pop %v388
      %v429 = vmul.f32 1.0, %v428
      %v430 = vrcp.pop %v389
      %v431 = vmul.f32 1.0, %v430
      %v432 = vrcp.pop %v390
      %v433 = vmul.f32 1.0, %v432
      %v434 = vrcp.pop %v391
      %v435 = vmul.f32 1.0, %v434
      %v436 = vrcp.pop %v392
      %v437 = vmul.f32 1.0, %v436
      %v438 = vrcp.pop %v393
      %v439 = vmul.f32 1.0, %v438
      %v440 = vrcp.pop %v394
      %v441 = vmul.f32 1.0, %v440
      %v442 = vrcp.pop %v395
      %v443 = vmul.f32 1.0, %v442
      %v444 = vrcp.pop %v396
      %v445 = vmul.f32 1.0, %v444
      %v446 = vrcp.pop %v397
      %v447 = vmul.f32 1.0, %v446
      %v448 = vrcp.pop %v398
      %v449 = vmul.f32 1.0, %v448
      %v450 = vrcp.pop %v399
      %v451 = vmul.f32 1.0, %v450
      %v452 = vrcp.pop %v400
      %v453 = vmul.f32 1.0, %v452
      %v454 = vrcp.pop %v401
      %v455 = vmul.f32 1.0, %v454
      %v456 = vrcp.pop %v402
      %v457 = vmul.f32 1.0, %v456
      %v458 = vrcp.pop %v403
      %v459 = vmul.f32 1.0, %v458
      %v460 = vrcp.pop %v404
      %v461 = vmul.f32 1.0, %v460
      %v462 = vrcp.pop %v405
      %v463 = vmul.f32 1.0, %v462
      %v464 = vrcp.pop %v406
      %v465 = vmul.f32 1.0, %v464
      %v466 = vrcp.pop %v407
      %v467 = vmul.f32 1.0, %v466
      %v468 = vrcp.pop %v408
      %v469 = vmul.f32 1.0, %v468
      %v470 = vrcp.pop %v409
      %v471 = vmul.f32 1.0, %v470
      %v472 = vrcp.pop %v410
      %v473 = vmul.f32 1.0, %v472
      %v474 = vrcp.pop %v411
      %v475 = vmul.f32 1.0, %v474
      %v476 = vmul.f32 %v252, %v413
      %v477 = vmul.f32 %v253, %v415
      %v478 = vmul.f32 %v254, %v417
      %v479 = vmul.f32 %v255, %v419
      %v480 = vmul.f32 %v256, %v421
      %v481 = vmul.f32 %v257, %v423
      %v482 = vmul.f32 %v258, %v425
      %v483 = vmul.f32 %v259, %v427
      %v484 = vmul.f32 %v260, %v429
      %v485 = vmul.f32 %v261, %v431
      %v486 = vmul.f32 %v262, %v433
      %v487 = vmul.f32 %v263, %v435
      %v488 = vmul.f32 %v264, %v437
      %v489 = vmul.f32 %v265, %v439
      %v490 = vmul.f32 %v266, %v441
      %v491 = vmul.f32 %v267, %v443
      %v492 = vmul.f32 %v268, %v445
      %v493 = vmul.f32 %v269, %v447
      %v494 = vmul.f32 %v270, %v449
      %v495 = vmul.f32 %v271, %v451
      %v496 = vmul.f32 %v272, %v453
      %v497 = vmul.f32 %v273, %v455
      %v498 = vmul.f32 %v274, %v457
      %v499 = vmul.f32 %v275, %v459
      %v500 = vmul.f32 %v276, %v461
      %v501 = vmul.f32 %v277, %v463
      %v502 = vmul.f32 %v278, %v465
      %v503 = vmul.f32 %v279, %v467
      %v504 = vmul.f32 %v280, %v469
      %v505 = vmul.f32 %v281, %v471
      %v506 = vmul.f32 %v282, %v473
      %v507 = vmul.f32 %v283, %v475
      %508 = vst [vmem:[%s172] sm:$0xff] %v476
      %509 = vst [vmem:[%s172 + $0x8] sm:$0xff] %v477
      %510 = vst [vmem:[%s172 + $0x10] sm:$0xff] %v478
      %511 = vst [vmem:[%s172 + $0x18] sm:$0xff] %v479
      %512 = vst [vmem:[%s172 + $0x20] sm:$0xff] %v480
      %513 = vst [vmem:[%s172 + $0x28] sm:$0xff] %v481
      %514 = vst [vmem:[%s172 + $0x30] sm:$0xff] %v482
      %515 = vst [vmem:[%s172 + $0x38] sm:$0xff] %v483
      %516 = vst [vmem:[%s172 + $0x40] sm:$0xff] %v484
      %517 = vst [vmem:[%s172 + $0x48] sm:$0xff] %v485
      %518 = vst [vmem:[%s172 + $0x50] sm:$0xff] %v486
      %519 = vst [vmem:[%s172 + $0x58] sm:$0xff] %v487
      %520 = vst [vmem:[%s172 + $0x60] sm:$0xff] %v488
      %521 = vst [vmem:[%s172 + $0x68] sm:$0xff] %v489
      %522 = vst [vmem:[%s172 + $0x70] sm:$0xff] %v490
      %523 = vst [vmem:[%s172 + $0x78] sm:$0xff] %v491
      %524 = vst [vmem:[%s172 + $0x80] sm:$0xff] %v492
      %525 = vst [vmem:[%s172 + $0x88] sm:$0xff] %v493
      %526 = vst [vmem:[%s172 + $0x90] sm:$0xff] %v494
      %527 = vst [vmem:[%s172 + $0x98] sm:$0xff] %v495
      %528 = vst [vmem:[%s172 + $0xa0] sm:$0xff] %v496
      %529 = vst [vmem:[%s172 + $0xa8] sm:$0xff] %v497
      %530 = vst [vmem:[%s172 + $0xb0] sm:$0xff] %v498
      %531 = vst [vmem:[%s172 + $0xb8] sm:$0xff] %v499
      %532 = vst [vmem:[%s172 + $0xc0] sm:$0xff] %v500
      %533 = vst [vmem:[%s172 + $0xc8] sm:$0xff] %v501
      %534 = vst [vmem:[%s172 + $0xd0] sm:$0xff] %v502
      %535 = vst [vmem:[%s172 + $0xd8] sm:$0xff] %v503
      %536 = vst [vmem:[%s172 + $0xe0] sm:$0xff] %v504
      %537 = vst [vmem:[%s172 + $0xe8] sm:$0xff] %v505
      %538 = vst [vmem:[%s172 + $0xf0] sm:$0xff] %v506
      %539 = vst [vmem:[%s172 + $0xf8] sm:$0xff] %v507
      %s540 = smul.u32 32, %s14
      %p541 = scmp.lt.s32.totalorder %s540, 63
      %s542 = scalar_select %p541, %s540, 63
      %s543 = smul.addr %s542, 8
      %s544 = scalar_lea.vmem %s3, %s543
      // Predicated region
      $region33: #{double_conv_forward.5} parent=31 // pred_check
        %p545 = pneg %p100
      $region34: #{double_conv_forward.5} parent=31 // pred_check_branch
        %547 = sbr.rel (%p545) target = $region36
      $region35: #{double_conv_forward.5} parent=31 // pred_region
        %s548 = smul.u32 32, %s14
      $region36: #{double_conv_forward.5} parent=31 // pred_fallthru
        _
    $region32: #{double_conv_forward.5} parent=5 // pred_fallthru
      _
    %p549 = scmp.le.s32.totalorder 2, %s9
    // Predicated region
    $region37: #{double_conv_forward.5} parent=5 // pred_check
      %p550 = pneg %p549
    $region38: #{double_conv_forward.5} parent=5 // pred_check_branch
      %552 = sbr.rel (%p550) target = $region40
    $region39: #{double_conv_forward.5} parent=5 // pred_region
      %s553 = ssub.s32 %s9, 2
      // Predicated region
      $region41: #{double_conv_forward.5} parent=39 // pred_check
        %p554 = pneg %p106
      $region42: #{double_conv_forward.5} parent=39 // pred_check_branch
        %556 = sbr.rel (%p554) target = $region44
      $region43: #{double_conv_forward.5} parent=39 // pred_region
        %s557 = smul.u32 32, %s15
        %p558 = scmp.lt.s32.totalorder %s557, 63
        %s559 = scalar_select %p558, %s557, 63
        %s560 = smul.addr %s559, 8
        %s561 = scalar_lea.vmem %s3, %s560
      $region44: #{double_conv_forward.5} parent=39 // pred_fallthru
        _
    $region40: #{double_conv_forward.5} parent=5 // pred_fallthru
      _
  $region6: #{double_conv_forward.5} parent=0 // loop_footer
    %s13 = sadd.s32 1, %s9
  $region7: #{double_conv_forward.5} parent=0 // loop_footer_branch
    %8 = sbr.rel target = $region3
  $region8: #{double_conv_forward.5} parent=0 // loop_exit
    _

// kernel: double_conv_forward.4
$region0: #{double_conv_forward.4}
  #allocation0 [shape = 'u32[]', space=smem, size = 0x4, offset = 0x4, fixed_abs, tag = 'smem constant byte address 0x4 - core index']
  #allocation1 [shape = 'u32[144,128]{1,0:T(1,128)}', space=vmem, size = 0x12000, scoped, tag = 'internal scratch']
  %s0 = inlined_call_operand.vmem [shape: bf16[512,128], index: 0, kind: input, shape index: {}]
  %s1 = inlined_call_operand.vmem [shape: bf16[128,128], index: 1, kind: input, shape index: {}]
  %s2 = inlined_call_operand.vmem [shape: f32[512,128], index: 2, kind: output, shape index: {0}]
  %s3 = inlined_call_operand.vmem [shape: f32[1,128], index: 3, kind: output, shape index: {1}]
  %s4 = inlined_call_operand.vmem [shape: f32[1,128], index: 4, kind: output, shape index: {2}]
  %5 = xla_tuple %s2, %s3, %s4
  %s6 = sld [smem:[#allocation0]]
  $region61: #{double_conv_forward.4} parent=0
    _
  %s8 = ssub.s32 1, %s6
  %s9 = scalar_select 0, %s8, %s6
  loop: start=0, step=1, limit=4
  $region2: #{double_conv_forward.4} parent=0 // loop_pre_header
    _
  $region3: #{double_conv_forward.4} parent=0 // loop_header
    %s11 = sphi 0, %s15
    %p12 = scmp.ge.s32.totalorder %s11, 4
    %s21 = sphi 0, %s23
    %s24 = sphi 0, %s21
    %s25 = sphi 0, %s24
    %s41 = sphi 0, %s25
    %s45 = sphi 0, %s45
    %s47 = sphi 0, %s45
    %s48 = sphi 0, %s47
    %s62 = sphi 0, %s48
    %s68 = sphi 0, %s70
    %s71 = sphi 0, %s68
    %s72 = sphi 0, %s71
    %s88 = sphi 0, %s72
    %s92 = sphi 0, %s92
    %s94 = sphi 0, %s92
    %s95 = sphi 0, %s94
    %s109 = sphi 0, %s95
    %s113 = sphi 0, %s113
    %s115 = sphi 0, %s113
    %s116 = sphi 0, %s115
    %s130 = sphi 0, %s116
  $region4: #{double_conv_forward.4} parent=0 // loop_header_branch
    %14 = sbr.rel (%p12) target = $region8
  $region5: #{double_conv_forward.4} parent=0 // loop_body
    %s16 = ssub.s32 %s11, 1
    %s17 = ssub.s32 %s11, 2
    %s18 = sadd.s32 %s11, 1
    %s19 = ssub.s32 %s11, %s18
    %p20 = scmp.eq.s32.totalorder %s19, 0
    %s22 = sadd.s32 %s21, 1
    %s23 = scalar_select %p20, %s21, %s22
    %p26 = pneg %p20
    %p27 = scmp.eq.s32.totalorder %s11, 1
    %p28 = por %p26, %p27
    %p29 = scmp.ne.s32.totalorder %s21, %s24
    %p30 = scmp.eq.s32.totalorder %s11, 0
    %p31 = por %p29, %p30
    %p32 = scmp.ne.s32.totalorder %s21, %s24
    %p33 = scmp.eq.s32.totalorder %s16, 1
    %p34 = por %p32, %p33
    %p35 = scmp.ne.s32.totalorder %s24, %s25
    %p36 = scmp.eq.s32.totalorder %s16, 0
    %p37 = por %p35, %p36
    %p38 = scmp.ne.s32.totalorder %s24, %s25
    %p39 = scmp.eq.s32.totalorder %s17, 1
    %p40 = por %p38, %p39
    %p42 = scmp.ne.s32.totalorder %s25, %s41
    %p43 = scmp.eq.s32.totalorder %s17, 0
    %p44 = por %p42, %p43
    %s46 = sadd.s32 %s45, 1
    %p49 = scmp.eq.s32.totalorder %s11, 1
    %p50 = scmp.ne.s32.totalorder %s45, %s47
    %p51 = scmp.eq.s32.totalorder %s11, 0
    %p52 = por %p50, %p51
    %p53 = scmp.ne.s32.totalorder %s45, %s47
    %p54 = scmp.eq.s32.totalorder %s16, 1
    %p55 = por %p53, %p54
    %p56 = scmp.ne.s32.totalorder %s47, %s48
    %p57 = scmp.eq.s32.totalorder %s16, 0
    %p58 = por %p56, %p57
    %p59 = scmp.ne.s32.totalorder %s47, %s48
    %p60 = scmp.eq.s32.totalorder %s17, 1
    %p61 = por %p59, %p60
    %p63 = scmp.ne.s32.totalorder %s48, %s62
    %p64 = scmp.eq.s32.totalorder %s17, 0
    %p65 = por %p63, %p64
    %s66 = ssub.s32 %s11, %s18
    %p67 = scmp.eq.s32.totalorder %s66, 0
    %s69 = sadd.s32 %s68, 1
    %s70 = scalar_select %p67, %s68, %s69
    %p73 = pneg %p67
    %p74 = scmp.eq.s32.totalorder %s11, 1
    %p75 = por %p73, %p74
    %p76 = scmp.ne.s32.totalorder %s68, %s71
    %p77 = scmp.eq.s32.totalorder %s11, 0
    %p78 = por %p76, %p77
    %p79 = scmp.ne.s32.totalorder %s68, %s71
    %p80 = scmp.eq.s32.totalorder %s16, 1
    %p81 = por %p79, %p80
    %p82 = scmp.ne.s32.totalorder %s71, %s72
    %p83 = scmp.eq.s32.totalorder %s16, 0
    %p84 = por %p82, %p83
    %p85 = scmp.ne.s32.totalorder %s71, %s72
    %p86 = scmp.eq.s32.totalorder %s17, 1
    %p87 = por %p85, %p86
    %p89 = scmp.ne.s32.totalorder %s72, %s88
    %p90 = scmp.eq.s32.totalorder %s17, 0
    %p91 = por %p89, %p90
    %s93 = sadd.s32 %s92, 1
    %p96 = scmp.eq.s32.totalorder %s11, 1
    %p97 = scmp.ne.s32.totalorder %s92, %s94
    %p98 = scmp.eq.s32.totalorder %s11, 0
    %p99 = por %p97, %p98
    %p100 = scmp.ne.s32.totalorder %s92, %s94
    %p101 = scmp.eq.s32.totalorder %s16, 1
    %p102 = por %p100, %p101
    %p103 = scmp.ne.s32.totalorder %s94, %s95
    %p104 = scmp.eq.s32.totalorder %s16, 0
    %p105 = por %p103, %p104
    %p106 = scmp.ne.s32.totalorder %s94, %s95
    %p107 = scmp.eq.s32.totalorder %s17, 1
    %p108 = por %p106, %p107
    %p110 = scmp.ne.s32.totalorder %s95, %s109
    %p111 = scmp.eq.s32.totalorder %s17, 0
    %p112 = por %p110, %p111
    %s114 = sadd.s32 %s113, 1
    %p117 = scmp.eq.s32.totalorder %s11, 1
    %p118 = scmp.ne.s32.totalorder %s113, %s115
    %p119 = scmp.eq.s32.totalorder %s11, 0
    %p120 = por %p118, %p119
    %p121 = scmp.ne.s32.totalorder %s113, %s115
    %p122 = scmp.eq.s32.totalorder %s16, 1
    %p123 = por %p121, %p122
    %p124 = scmp.ne.s32.totalorder %s115, %s116
    %p125 = scmp.eq.s32.totalorder %s16, 0
    %p126 = por %p124, %p125
    %p127 = scmp.ne.s32.totalorder %s115, %s116
    %p128 = scmp.eq.s32.totalorder %s17, 1
    %p129 = por %p127, %p128
    %p131 = scmp.ne.s32.totalorder %s116, %s130
    %p132 = scmp.eq.s32.totalorder %s17, 0
    %p133 = por %p131, %p132
    %p134 = scmp.le.s32.totalorder 1, %s11
    %p135 = scmp.lt.s32.totalorder %s11, 3
    %p136 = pnand %p134, %p135
    %p137 = pneg %p136
    // Predicated region
    $region9: #{double_conv_forward.4} parent=5 // pred_check
      _
    $region10: #{double_conv_forward.4} parent=5 // pred_check_branch
      %139 = sbr.rel (%p136) target = $region12
    $region11: #{double_conv_forward.4} parent=5 // pred_region
      %s140 = ssub.s32 %s11, 1
      // Predicated region
      $region13: #{double_conv_forward.4} parent=11 // pred_check
        %p141 = pneg %p58
      $region14: #{double_conv_forward.4} parent=11 // pred_check_branch
        %143 = sbr.rel (%p141) target = $region16
      $region15: #{double_conv_forward.4} parent=11 // pred_region
        _
      $region16: #{double_conv_forward.4} parent=11 // pred_fallthru
        _
    $region12: #{double_conv_forward.4} parent=5 // pred_fallthru
      _
    %p144 = scmp.lt.s32.totalorder %s11, 2
    // Predicated region
    $region17: #{double_conv_forward.4} parent=5 // pred_check
      %p145 = pneg %p144
    $region18: #{double_conv_forward.4} parent=5 // pred_check_branch
      %147 = sbr.rel (%p145) target = $region20
    $region19: #{double_conv_forward.4} parent=5 // pred_region
      // Predicated region
      $region21: #{double_conv_forward.4} parent=19 // pred_check
        %p148 = pneg %p31
      $region22: #{double_conv_forward.4} parent=19 // pred_check_branch
        %150 = sbr.rel (%p148) target = $region24
      $region23: #{double_conv_forward.4} parent=19 // pred_region
        %s151 = smul.u32 32, %s11
        %p152 = scmp.lt.s32.totalorder %s151, 63
        %s153 = scalar_select %p152, %s151, 63
        %s154 = smul.addr %s153, 4
        %s155 = scalar_lea.vmem %s0, %s154
        %s156 = smul.u32 32, %s11
      $region24: #{double_conv_forward.4} parent=19 // pred_fallthru
        _
    $region20: #{double_conv_forward.4} parent=5 // pred_fallthru
      _
    %p157 = scmp.le.s32.totalorder 1, %s11
    %p158 = scmp.lt.s32.totalorder %s11, 3
    %p159 = pnand %p157, %p158
    %p160 = pneg %p159
    // Predicated region
    $region25: #{double_conv_forward.4} parent=5 // pred_check
      _
    $region26: #{double_conv_forward.4} parent=5 // pred_check_branch
      %162 = sbr.rel (%p159) target = $region28
    $region27: #{double_conv_forward.4} parent=5 // pred_region
      %s163 = ssub.s32 %s11, 1
      %s164 = smul.u32 32, %s16
      %p165 = scmp.lt.s32.totalorder %s164, 63
      %s166 = scalar_select %p165, %s164, 63
      %s167 = smul.addr %s166, 4
      %s168 = scalar_lea.vmem %s0, %s167
      %p169 = pneg %p37
      %p170 = pneg %p34
      %p171 = pneg %p58
      %p172 = pneg %p55
      %p173 = pneg %p84
      %p174 = pneg %p81
      %s175 = smul.u32 32, %s16
      %p176 = scmp.lt.s32.totalorder %s175, 63
      %s177 = scalar_select %p176, %s175, 63
      %s178 = smul.addr %s177, 8
      %s179 = scalar_lea.vmem %s2, %s178
      %p180 = pneg %p105
      %p181 = pneg %p102
      %p182 = pneg %p126
      %p183 = pneg %p123
      %s184 = smul.u32 32, %s16
      %p185 = scmp.lt.s32.totalorder %s184, 63
      %s186 = scalar_select %p185, %s184, 63
      %s187 = smul.addr %s186, 4
      %s188 = scalar_lea.vmem %s0, %s187
      %s189 = smul.u32 32, %s16
      %s190 = smul.u32 32, %s16
      %p191 = scmp.lt.s32.totalorder %s190, 63
      %s192 = scalar_select %p191, %s190, 63
      %s193 = smul.addr %s192, 8
      %s194 = scalar_lea.vmem %s2, %s193
      %s195 = smul.u32 32, %s16
      %v197 = vld [vmem:[%s188] sm:$0xf]
      %v198 = vld [vmem:[%s188 + $0x4] sm:$0xf]
      %v199 = vld [vmem:[%s188 + $0x8] sm:$0xf]
      %v200 = vld [vmem:[%s188 + $0xc] sm:$0xf]
      %v201 = vld [vmem:[%s188 + $0x10] sm:$0xf]
      %v202 = vld [vmem:[%s188 + $0x14] sm:$0xf]
      %v203 = vld [vmem:[%s188 + $0x18] sm:$0xf]
      %v204 = vld [vmem:[%s188 + $0x1c] sm:$0xf]
      %v205 = vld [vmem:[%s188 + $0x20] sm:$0xf]
      %v206 = vld [vmem:[%s188 + $0x24] sm:$0xf]
      %v207 = vld [vmem:[%s188 + $0x28] sm:$0xf]
      %v208 = vld [vmem:[%s188 + $0x2c] sm:$0xf]
      %v209 = vld [vmem:[%s188 + $0x30] sm:$0xf]
      %v210 = vld [vmem:[%s188 + $0x34] sm:$0xf]
      %v211 = vld [vmem:[%s188 + $0x38] sm:$0xf]
      %v212 = vld [vmem:[%s188 + $0x3c] sm:$0xf]
      %v213 = vld [vmem:[%s188 + $0x40] sm:$0xf]
      %v214 = vld [vmem:[%s188 + $0x44] sm:$0xf]
      %v215 = vld [vmem:[%s188 + $0x48] sm:$0xf]
      %v216 = vld [vmem:[%s188 + $0x4c] sm:$0xf]
      %v217 = vld [vmem:[%s188 + $0x50] sm:$0xf]
      %v218 = vld [vmem:[%s188 + $0x54] sm:$0xf]
      %v219 = vld [vmem:[%s188 + $0x58] sm:$0xf]
      %v220 = vld [vmem:[%s188 + $0x5c] sm:$0xf]
      %v221 = vld [vmem:[%s188 + $0x60] sm:$0xf]
      %v222 = vld [vmem:[%s188 + $0x64] sm:$0xf]
      %v223 = vld [vmem:[%s188 + $0x68] sm:$0xf]
      %v224 = vld [vmem:[%s188 + $0x6c] sm:$0xf]
      %v225 = vld [vmem:[%s188 + $0x70] sm:$0xf]
      %v226 = vld [vmem:[%s188 + $0x74] sm:$0xf]
      %v227 = vld [vmem:[%s188 + $0x78] sm:$0xf]
      %v228 = vld [vmem:[%s188 + $0x7c] sm:$0xf]
      %v229 = vld [vmem:[%s1] sm:$0xf]
      %v230 = vld [vmem:[%s1 + $0x4] sm:$0xf]
      %v231 = vld [vmem:[%s1 + $0x8] sm:$0xf]
      %v232 = vld [vmem:[%s1 + $0xc] sm:$0xf]
      %v233 = vld [vmem:[%s1 + $0x10] sm:$0xf]
      %v234 = vld [vmem:[%s1 + $0x14] sm:$0xf]
      %v235 = vld [vmem:[%s1 + $0x18] sm:$0xf]
      %v236 = vld [vmem:[%s1 + $0x1c] sm:$0xf]
      %v237 = vld [vmem:[%s1 + $0x20] sm:$0xf]
      %v238 = vld [vmem:[%s1 + $0x24] sm:$0xf]
      %v239 = vld [vmem:[%s1 + $0x28] sm:$0xf]
      %v240 = vld [vmem:[%s1 + $0x2c] sm:$0xf]
      %v241 = vld [vmem:[%s1 + $0x30] sm:$0xf]
      %v242 = vld [vmem:[%s1 + $0x34] sm:$0xf]
      %v243 = vld [vmem:[%s1 + $0x38] sm:$0xf]
      %v244 = vld [vmem:[%s1 + $0x3c] sm:$0xf]
      %v277 = vunpack.c.l.b16 %v197
      %v278 = vunpack.c.l.b16 %v198
      %v279 = vunpack.c.l.b16 %v199
      %v280 = vunpack.c.l.b16 %v200
      %v281 = vunpack.c.l.b16 %v201
      %v282 = vunpack.c.l.b16 %v202
      %v283 = vunpack.c.l.b16 %v203
      %v284 = vunpack.c.l.b16 %v204
      %v285 = vunpack.c.l.b16 %v205
      %v286 = vunpack.c.l.b16 %v206
      %v287 = vunpack.c.l.b16 %v207
      %v288 = vunpack.c.l.b16 %v208
      %v289 = vunpack.c.l.b16 %v209
      %v290 = vunpack.c.l.b16 %v210
      %v291 = vunpack.c.l.b16 %v211
      %v292 = vunpack.c.l.b16 %v212
      %v293 = vunpack.c.l.b16 %v213
      %v294 = vunpack.c.l.b16 %v214
      %v295 = vunpack.c.l.b16 %v215
      %v296 = vunpack.c.l.b16 %v216
      %v297 = vunpack.c.l.b16 %v217
      %v298 = vunpack.c.l.b16 %v218
      %v299 = vunpack.c.l.b16 %v219
      %v300 = vunpack.c.l.b16 %v220
      %v301 = vunpack.c.l.b16 %v221
      %v302 = vunpack.c.l.b16 %v222
      %v303 = vunpack.c.l.b16 %v223
      %v304 = vunpack.c.l.b16 %v224
      %v305 = vunpack.c.l.b16 %v225
      %v306 = vunpack.c.l.b16 %v226
      %v307 = vunpack.c.l.b16 %v227
      %v308 = vunpack.c.l.b16 %v228
      %v309 = vpack.c.b16 %v278, %v277
      %v310 = vpack.c.b16 %v280, %v279
      %v311 = vpack.c.b16 %v282, %v281
      %v312 = vpack.c.b16 %v284, %v283
      %v313 = vpack.c.b16 %v286, %v285
      %v314 = vpack.c.b16 %v288, %v287
      %v315 = vpack.c.b16 %v290, %v289
      %v316 = vpack.c.b16 %v292, %v291
      %v317 = vpack.c.b16 %v294, %v293
      %v318 = vpack.c.b16 %v296, %v295
      %v319 = vpack.c.b16 %v298, %v297
      %v320 = vpack.c.b16 %v300, %v299
      %v321 = vpack.c.b16 %v302, %v301
      %v322 = vpack.c.b16 %v304, %v303
      %v323 = vpack.c.b16 %v306, %v305
      %v324 = vpack.c.b16 %v308, %v307
      %v357 = vunpack.c.l.b16 %v229
      %v358 = vunpack.c.l.b16 %v230
      %v359 = vunpack.c.l.b16 %v231
      %v360 = vunpack.c.l.b16 %v232
      %v361 = vunpack.c.l.b16 %v233
      %v362 = vunpack.c.l.b16 %v234
      %v363 = vunpack.c.l.b16 %v235
      %v364 = vunpack.c.l.b16 %v236
      %v365 = vunpack.c.l.b16 %v237
      %v366 = vunpack.c.l.b16 %v238
      %v367 = vunpack.c.l.b16 %v239
      %v368 = vunpack.c.l.b16 %v240
      %v369 = vunpack.c.l.b16 %v241
      %v370 = vunpack.c.l.b16 %v242
      %v371 = vunpack.c.l.b16 %v243
      %v372 = vunpack.c.l.b16 %v244
      %v373 = vpack.c.b16 %v358, %v357
      %v374 = vpack.c.b16 %v360, %v359
      %v375 = vpack.c.b16 %v362, %v361
      %v376 = vpack.c.b16 %v364, %v363
      %v377 = vpack.c.b16 %v366, %v365
      %v378 = vpack.c.b16 %v368, %v367
      %v379 = vpack.c.b16 %v370, %v369
      %v380 = vpack.c.b16 %v372, %v371
      %389 = vmatprep.subr.bf16.mxu0 0
      %390 = vmatpush1.bf16.msra.mxu0 %v373
      %391 = vmatprep.subr.bf16.mxu0 0
      %392 = vmatpush1.bf16.msra.mxu0 %v374
      %393 = vmatprep.subr.bf16.mxu0 0
      %394 = vmatpush1.bf16.msra.mxu0 %v375
      %395 = vmatprep.subr.bf16.mxu0 0
      %396 = vmatpush1.bf16.msra.mxu0 %v376
      %397 = vmatprep.subr.bf16.mxu0 0
      %398 = vmatpush1.bf16.msra.mxu0 %v377
      %399 = vmatprep.subr.bf16.mxu0 0
      %400 = vmatpush1.bf16.msra.mxu0 %v378
      %401 = vmatprep.subr.bf16.mxu0 0
      %402 = vmatpush1.bf16.msra.mxu0 %v379
      %403 = vmatprep.subr.bf16.mxu0 0
      %404 = vmatpush1.bf16.msra.mxu0 %v380
      %405 = vmatprep.subr.bf16.mxu0 0
      %406 = vmatpush1.bf16.msra.mxu0 0
      %407 = vmatprep.subr.bf16.mxu0 0
      %408 = vmatpush1.bf16.msra.mxu0 0
      %409 = vmatprep.subr.bf16.mxu0 0
      %410 = vmatpush1.bf16.msra.mxu0 0
      %411 = vmatprep.subr.bf16.mxu0 0
      %412 = vmatpush1.bf16.msra.mxu0 0
      %413 = vmatprep.subr.bf16.mxu0 0
      %414 = vmatpush1.bf16.msra.mxu0 0
      %415 = vmatprep.subr.bf16.mxu0 0
      %416 = vmatpush1.bf16.msra.mxu0 0
      %417 = vmatprep.subr.bf16.mxu0 0
      %418 = vmatpush1.bf16.msra.mxu0 0
      %419 = vmatprep.subr.bf16.mxu0 0
      %420 = vmatpush1.bf16.msra.mxu0 0
      %421 = vmatprep.mubr.bf16.mxu0 0
      %422 = vmatmul.mubr.bf16.gmra.mrb[0].mxu0 %v309
      %v423 = vpop.f32.mrb[0].mxu0
      %v424 = vadd.f32 0.0, %v423
      %v425 = vpop.f32.mrb[0].mxu0
      %v426 = vpop.f32.mrb[0].mxu0
      %v427 = vadd.f32 0.0, %v426
      %v428 = vpop.f32.mrb[0].mxu0
      %429 = vmatprep.mubr.bf16.mxu0 0
      %430 = vmatmul.mubr.bf16.gmra.mrb[0].mxu0 %v310
      %v431 = vpop.f32.mrb[0].mxu0
      %v432 = vadd.f32 0.0, %v431
      %v433 = vpop.f32.mrb[0].mxu0
      %v434 = vpop.f32.mrb[0].mxu0
      %v435 = vadd.f32 0.0, %v434
      %v436 = vpop.f32.mrb[0].mxu0
      %437 = vmatprep.mubr.bf16.mxu0 0
      %438 = vmatmul.mubr.bf16.gmra.mrb[0].mxu0 %v311
      %v439 = vpop.f32.mrb[0].mxu0
      %v440 = vadd.f32 0.0, %v439
      %v441 = vpop.f32.mrb[0].mxu0
      %v442 = vpop.f32.mrb[0].mxu0
      %v443 = vadd.f32 0.0, %v442
      %v444 = vpop.f32.mrb[0].mxu0
      %445 = vmatprep.mubr.bf16.mxu0 0
      %446 = vmatmul.mubr.bf16.gmra.mrb[0].mxu0 %v312
      %v447 = vpop.f32.mrb[0].mxu0
      %v448 = vadd.f32 0.0, %v447
      %v449 = vpop.f32.mrb[0].mxu0
      %v450 = vpop.f32.mrb[0].mxu0
      %v451 = vadd.f32 0.0, %v450
      %v452 = vpop.f32.mrb[0].mxu0
      %453 = vmatprep.mubr.bf16.mxu0 0
      %454 = vmatmul.mubr.bf16.gmra.mrb[0].mxu0 %v313
      %v455 = vpop.f32.mrb[0].mxu0
      %v456 = vadd.f32 0.0, %v455
      %v457 = vpop.f32.mrb[0].mxu0
      %v458 = vpop.f32.mrb[0].mxu0
      %v459 = vadd.f32 0.0, %v458
      %v460 = vpop.f32.mrb[0].mxu0
      %461 = vmatprep.mubr.bf16.mxu0 0
      %462 = vmatmul.mubr.bf16.gmra.mrb[0].mxu0 %v314
      %v463 = vpop.f32.mrb[0].mxu0
      %v464 = vadd.f32 0.0, %v463
      %v465 = vpop.f32.mrb[0].mxu0
      %v466 = vpop.f32.mrb[0].mxu0
      %v467 = vadd.f32 0.0, %v466
      %v468 = vpop.f32.mrb[0].mxu0
      %469 = vmatprep.mubr.bf16.mxu0 0
      %470 = vmatmul.mubr.bf16.gmra.mrb[0].mxu0 %v315
      %v471 = vpop.f32.mrb[0].mxu0
      %v472 = vadd.f32 0.0, %v471
      %v473 = vpop.f32.mrb[0].mxu0
      %v474 = vpop.f32.mrb[0].mxu0
      %v475 = vadd.f32 0.0, %v474
      %v476 = vpop.f32.mrb[0].mxu0
      %477 = vmatprep.mubr.bf16.mxu0 0
      %478 = vmatmul.mubr.bf16.gmra.mrb[0].mxu0 %v316
      %v479 = vpop.f32.mrb[0].mxu0
      %v480 = vadd.f32 0.0, %v479
      %v481 = vpop.f32.mrb[0].mxu0
      %v482 = vpop.f32.mrb[0].mxu0
      %v483 = vadd.f32 0.0, %v482
      %v484 = vpop.f32.mrb[0].mxu0
      %485 = vmatprep.mubr.bf16.mxu0 0
      %486 = vmatmul.mubr.bf16.gmra.mrb[0].mxu0 %v317
      %v487 = vpop.f32.mrb[0].mxu0
      %v488 = vadd.f32 0.0, %v487
      %v489 = vpop.f32.mrb[0].mxu0
      %v490 = vpop.f32.mrb[0].mxu0
      %v491 = vadd.f32 0.0, %v490
      %v492 = vpop.f32.mrb[0].mxu0
      %493 = vmatprep.mubr.bf16.mxu0 0
      %494 = vmatmul.mubr.bf16.gmra.mrb[0].mxu0 %v318
      %v495 = vpop.f32.mrb[0].mxu0
      %v496 = vadd.f32 0.0, %v495
      %v497 = vpop.f32.mrb[0].mxu0
      %v498 = vpop.f32.mrb[0].mxu0
      %v499 = vadd.f32 0.0, %v498
      %v500 = vpop.f32.mrb[0].mxu0
      %501 = vmatprep.mubr.bf16.mxu0 0
      %502 = vmatmul.mubr.bf16.gmra.mrb[0].mxu0 %v319
      %v503 = vpop.f32.mrb[0].mxu0
      %v504 = vadd.f32 0.0, %v503
      %v505 = vpop.f32.mrb[0].mxu0
      %v506 = vpop.f32.mrb[0].mxu0
      %v507 = vadd.f32 0.0, %v506
      %v508 = vpop.f32.mrb[0].mxu0
      %509 = vmatprep.mubr.bf16.mxu0 0
      %510 = vmatmul.mubr.bf16.gmra.mrb[0].mxu0 %v320
      %v511 = vpop.f32.mrb[0].mxu0
      %v512 = vadd.f32 0.0, %v511
      %v513 = vpop.f32.mrb[0].mxu0
      %v514 = vpop.f32.mrb[0].mxu0
      %v515 = vadd.f32 0.0, %v514
      %v516 = vpop.f32.mrb[0].mxu0
      %517 = vmatprep.mubr.bf16.mxu0 0
      %518 = vmatmul.mubr.bf16.gmra.mrb[0].mxu0 %v321
      %v519 = vpop.f32.mrb[0].mxu0
      %v520 = vadd.f32 0.0, %v519
      %v521 = vpop.f32.mrb[0].mxu0
      %v522 = vpop.f32.mrb[0].mxu0
      %v523 = vadd.f32 0.0, %v522
      %v524 = vpop.f32.mrb[0].mxu0
      %525 = vmatprep.mubr.bf16.mxu0 0
      %526 = vmatmul.mubr.bf16.gmra.mrb[0].mxu0 %v322
      %v527 = vpop.f32.mrb[0].mxu0
      %v528 = vadd.f32 0.0, %v527
      %v529 = vpop.f32.mrb[0].mxu0
      %v530 = vpop.f32.mrb[0].mxu0
      %v531 = vadd.f32 0.0, %v530
      %v532 = vpop.f32.mrb[0].mxu0
      %533 = vmatprep.mubr.bf16.mxu0 0
      %534 = vmatmul.mubr.bf16.gmra.mrb[0].mxu0 %v323
      %v535 = vpop.f32.mrb[0].mxu0
      %v536 = vadd.f32 0.0, %v535
      %v537 = vpop.f32.mrb[0].mxu0
      %v538 = vpop.f32.mrb[0].mxu0
      %v539 = vadd.f32 0.0, %v538
      %v540 = vpop.f32.mrb[0].mxu0
      %541 = vmatprep.mubr.bf16.mxu0 0
      %542 = vmatmul.mubr.bf16.gmra.mrb[0].mxu0 %v324
      %v543 = vpop.f32.mrb[0].mxu0
      %v544 = vadd.f32 0.0, %v543
      %v545 = vpop.f32.mrb[0].mxu0
      %v546 = vpop.f32.mrb[0].mxu0
      %v547 = vadd.f32 0.0, %v546
      %v548 = vpop.f32.mrb[0].mxu0
      %549 = vdwg.mxu0
      %550 = vst [vmem:[%s194] sm:$0xff] %v424
      %551 = vst [vmem:[%s194 + $0x8] sm:$0xff] %v427
      %552 = vst [vmem:[%s194 + $0x10] sm:$0xff] %v432
      %553 = vst [vmem:[%s194 + $0x18] sm:$0xff] %v435
      %554 = vst [vmem:[%s194 + $0x20] sm:$0xff] %v440
      %555 = vst [vmem:[%s194 + $0x28] sm:$0xff] %v443
      %556 = vst [vmem:[%s194 + $0x30] sm:$0xff] %v448
      %557 = vst [vmem:[%s194 + $0x38] sm:$0xff] %v451
      %558 = vst [vmem:[%s194 + $0x40] sm:$0xff] %v456
      %559 = vst [vmem:[%s194 + $0x48] sm:$0xff] %v459
      %560 = vst [vmem:[%s194 + $0x50] sm:$0xff] %v464
      %561 = vst [vmem:[%s194 + $0x58] sm:$0xff] %v467
      %562 = vst [vmem:[%s194 + $0x60] sm:$0xff] %v472
      %563 = vst [vmem:[%s194 + $0x68] sm:$0xff] %v475
      %564 = vst [vmem:[%s194 + $0x70] sm:$0xff] %v480
      %565 = vst [vmem:[%s194 + $0x78] sm:$0xff] %v483
      %566 = vst [vmem:[%s194 + $0x80] sm:$0xff] %v488
      %567 = vst [vmem:[%s194 + $0x88] sm:$0xff] %v491
      %568 = vst [vmem:[%s194 + $0x90] sm:$0xff] %v496
      %569 = vst [vmem:[%s194 + $0x98] sm:$0xff] %v499
      %570 = vst [vmem:[%s194 + $0xa0] sm:$0xff] %v504
      %571 = vst [vmem:[%s194 + $0xa8] sm:$0xff] %v507
      %572 = vst [vmem:[%s194 + $0xb0] sm:$0xff] %v512
      %573 = vst [vmem:[%s194 + $0xb8] sm:$0xff] %v515
      %574 = vst [vmem:[%s194 + $0xc0] sm:$0xff] %v520
      %575 = vst [vmem:[%s194 + $0xc8] sm:$0xff] %v523
      %576 = vst [vmem:[%s194 + $0xd0] sm:$0xff] %v528
      %577 = vst [vmem:[%s194 + $0xd8] sm:$0xff] %v531
      %578 = vst [vmem:[%s194 + $0xe0] sm:$0xff] %v536
      %579 = vst [vmem:[%s194 + $0xe8] sm:$0xff] %v539
      %580 = vst [vmem:[%s194 + $0xf0] sm:$0xff] %v544
      %581 = vst [vmem:[%s194 + $0xf8] sm:$0xff] %v547
      %p582 = scmp.eq.s32.totalorder %s16, 0
      // Predicated region
      $region29: #{double_conv_forward.4} parent=27 // pred_check
        %p583 = pneg %p582
      $region30: #{double_conv_forward.4} parent=27 // pred_check_branch
        %585 = sbr.rel (%p583) target = $region32
      $region31: #{double_conv_forward.4} parent=27 // pred_region
        %586 = vst [vmem:[%s3] sm:$0x1] 0.0
        %587 = vst [vmem:[%s4] sm:$0x1] 0.0
      $region32: #{double_conv_forward.4} parent=27 // pred_fallthru
        _
      %v588 = vld [vmem:[%s3] sm:$0x1]
      %v589 = vadd.f32 %v424, %v427
      %v590 = vadd.f32 %v589, %v432
      %v591 = vadd.f32 %v590, %v435
      %v592 = vadd.f32 %v591, %v440
      %v593 = vadd.f32 %v592, %v443
      %v594 = vadd.f32 %v593, %v448
      %v595 = vadd.f32 %v594, %v451
      %v596 = vadd.f32 %v595, %v456
      %v597 = vadd.f32 %v596, %v459
      %v598 = vadd.f32 %v597, %v464
      %v599 = vadd.f32 %v598, %v467
      %v600 = vadd.f32 %v599, %v472
      %v601 = vadd.f32 %v600, %v475
      %v602 = vadd.f32 %v601, %v480
      %v603 = vadd.f32 %v602, %v483
      %v604 = vadd.f32 %v603, %v488
      %v605 = vadd.f32 %v604, %v491
      %v606 = vadd.f32 %v605, %v496
      %v607 = vadd.f32 %v606, %v499
      %v608 = vadd.f32 %v607, %v504
      %v609 = vadd.f32 %v608, %v507
      %v610 = vadd.f32 %v609, %v512
      %v611 = vadd.f32 %v610, %v515
      %v612 = vadd.f32 %v611, %v520
      %v613 = vadd.f32 %v612, %v523
      %v614 = vadd.f32 %v613, %v528
      %v615 = vadd.f32 %v614, %v531
      %v616 = vadd.f32 %v615, %v536
      %v617 = vadd.f32 %v616, %v539
      %v618 = vadd.f32 %v617, %v544
      %v619 = vadd.f32 %v618, %v547
      %v620 = vrot.slane %v619, 4
      %v621 = vadd.f32 %v619, %v620
      %v622 = vrot.slane %v621, 2
      %v623 = vadd.f32 %v621, %v622
      %v624 = vrot.slane %v623, 1
      %v625 = vadd.f32 %v623, %v624
      %v626 = vadd.f32 %v588, %v625
      %627 = vst [vmem:[%s3] sm:$0x1] %v626
      %v628 = vld [vmem:[%s4] sm:$0x1]
      %v629 = vmul.f32 %v424, %v424
      %v630 = vmul.f32 %v427, %v427
      %v631 = vmul.f32 %v432, %v432
      %v632 = vmul.f32 %v435, %v435
      %v633 = vmul.f32 %v440, %v440
      %v634 = vmul.f32 %v443, %v443
      %v635 = vmul.f32 %v448, %v448
      %v636 = vmul.f32 %v451, %v451
      %v637 = vmul.f32 %v456, %v456
      %v638 = vmul.f32 %v459, %v459
      %v639 = vmul.f32 %v464, %v464
      %v640 = vmul.f32 %v467, %v467
      %v641 = vmul.f32 %v472, %v472
      %v642 = vmul.f32 %v475, %v475
      %v643 = vmul.f32 %v480, %v480
      %v644 = vmul.f32 %v483, %v483
      %v645 = vmul.f32 %v488, %v488
      %v646 = vmul.f32 %v491, %v491
      %v647 = vmul.f32 %v496, %v496
      %v648 = vmul.f32 %v499, %v499
      %v649 = vmul.f32 %v504, %v504
      %v650 = vmul.f32 %v507, %v507
      %v651 = vmul.f32 %v512, %v512
      %v652 = vmul.f32 %v515, %v515
      %v653 = vmul.f32 %v520, %v520
      %v654 = vmul.f32 %v523, %v523
      %v655 = vmul.f32 %v528, %v528
      %v656 = vmul.f32 %v531, %v531
      %v657 = vmul.f32 %v536, %v536
      %v658 = vmul.f32 %v539, %v539
      %v659 = vmul.f32 %v544, %v544
      %v660 = vmul.f32 %v547, %v547
      %v661 = vadd.f32 %v629, %v630
      %v662 = vadd.f32 %v661, %v631
      %v663 = vadd.f32 %v662, %v632
      %v664 = vadd.f32 %v663, %v633
      %v665 = vadd.f32 %v664, %v634
      %v666 = vadd.f32 %v665, %v635
      %v667 = vadd.f32 %v666, %v636
      %v668 = vadd.f32 %v667, %v637
      %v669 = vadd.f32 %v668, %v638
      %v670 = vadd.f32 %v669, %v639
      %v671 = vadd.f32 %v670, %v640
      %v672 = vadd.f32 %v671, %v641
      %v673 = vadd.f32 %v672, %v642
      %v674 = vadd.f32 %v673, %v643
      %v675 = vadd.f32 %v674, %v644
      %v676 = vadd.f32 %v675, %v645
      %v677 = vadd.f32 %v676, %v646
      %v678 = vadd.f32 %v677, %v647
      %v679 = vadd.f32 %v678, %v648
      %v680 = vadd.f32 %v679, %v649
      %v681 = vadd.f32 %v680, %v650
      %v682 = vadd.f32 %v681, %v651
      %v683 = vadd.f32 %v682, %v652
      %v684 = vadd.f32 %v683, %v653
      %v685 = vadd.f32 %v684, %v654
      %v686 = vadd.f32 %v685, %v655
      %v687 = vadd.f32 %v686, %v656
      %v688 = vadd.f32 %v687, %v657
      %v689 = vadd.f32 %v688, %v658
      %v690 = vadd.f32 %v689, %v659
      %v691 = vadd.f32 %v690, %v660
      %v692 = vrot.slane %v691, 4
      %v693 = vadd.f32 %v691, %v692
      %v694 = vrot.slane %v693, 2
      %v695 = vadd.f32 %v693, %v694
      %v696 = vrot.slane %v695, 1
      %v697 = vadd.f32 %v695, %v696
      %v698 = vadd.f32 %v628, %v697
      %699 = vst [vmem:[%s4] sm:$0x1] %v698
      %s700 = smul.u32 32, %s16
      %p701 = scmp.lt.s32.totalorder %s700, 63
      %s702 = scalar_select %p701, %s700, 63
      %s703 = smul.addr %s702, 8
      %s704 = scalar_lea.vmem %s2, %s703
      // Predicated region
      $region33: #{double_conv_forward.4} parent=27 // pred_check
        %p705 = pneg %p81
      $region34: #{double_conv_forward.4} parent=27 // pred_check_branch
        %707 = sbr.rel (%p705) target = $region36
      $region35: #{double_conv_forward.4} parent=27 // pred_region
        %s708 = smul.u32 32, %s16
      $region36: #{double_conv_forward.4} parent=27 // pred_fallthru
        _
      // Predicated region
      $region37: #{double_conv_forward.4} parent=27 // pred_check
        %p709 = pneg %p102
      $region38: #{double_conv_forward.4} parent=27 // pred_check_branch
        %711 = sbr.rel (%p709) target = $region40
      $region39: #{double_conv_forward.4} parent=27 // pred_region
        _
      $region40: #{double_conv_forward.4} parent=27 // pred_fallthru
        _
      // Predicated region
      $region41: #{double_conv_forward.4} parent=27 // pred_check
        %p712 = pneg %p123
      $region42: #{double_conv_forward.4} parent=27 // pred_check_branch
        %714 = sbr.rel (%p712) target = $region44
      $region43: #{double_conv_forward.4} parent=27 // pred_region
        _
      $region44: #{double_conv_forward.4} parent=27 // pred_fallthru
        _
      // Predicated region
      $region45: #{double_conv_forward.4} parent=27 // pred_check
        %p715 = pneg %p102
      $region46: #{double_conv_forward.4} parent=27 // pred_check_branch
        %717 = sbr.rel (%p715) target = $region48
      $region47: #{double_conv_forward.4} parent=27 // pred_region
        _
      $region48: #{double_conv_forward.4} parent=27 // pred_fallthru
        _
      // Predicated region
      $region49: #{double_conv_forward.4} parent=27 // pred_check
        %p718 = pneg %p123
      $region50: #{double_conv_forward.4} parent=27 // pred_check_branch
        %720 = sbr.rel (%p718) target = $region52
      $region51: #{double_conv_forward.4} parent=27 // pred_region
        _
      $region52: #{double_conv_forward.4} parent=27 // pred_fallthru
        _
    $region28: #{double_conv_forward.4} parent=5 // pred_fallthru
      _
    %p721 = scmp.le.s32.totalorder 2, %s11
    // Predicated region
    $region53: #{double_conv_forward.4} parent=5 // pred_check
      %p722 = pneg %p721
    $region54: #{double_conv_forward.4} parent=5 // pred_check_branch
      %724 = sbr.rel (%p722) target = $region56
    $region55: #{double_conv_forward.4} parent=5 // pred_region
      %s725 = ssub.s32 %s11, 2
      // Predicated region
      $region57: #{double_conv_forward.4} parent=55 // pred_check
        %p726 = pneg %p87
      $region58: #{double_conv_forward.4} parent=55 // pred_check_branch
        %728 = sbr.rel (%p726) target = $region60
      $region59: #{double_conv_forward.4} parent=55 // pred_region
        %s729 = smul.u32 32, %s17
        %p730 = scmp.lt.s32.totalorder %s729, 63
        %s731 = scalar_select %p730, %s729, 63
        %s732 = smul.addr %s731, 8
        %s733 = scalar_lea.vmem %s2, %s732
      $region60: #{double_conv_forward.4} parent=55 // pred_fallthru
        _
    $region56: #{double_conv_forward.4} parent=5 // pred_fallthru
      _
  $region6: #{double_conv_forward.4} parent=0 // loop_footer
    %s15 = sadd.s32 1, %s11
  $region7: #{double_conv_forward.4} parent=0 // loop_footer_branch
    %10 = sbr.rel target = $region3
  $region8: #{double_conv_forward.4} parent=0 // loop_exit
    _

</llo_original>
